<compile_context>
chip_gen: v5e
topology: v5e:2x2
jax: 0.10.0
libtpu: 0.0.40
codegen_flags: <defaults>
</compile_context>

<pallas_src>
import functools

import jax
import jax.numpy as jnp
from jax.experimental import pallas as pl
from jax.experimental.pallas import tpu as pltpu

_LANES = 128


def _layernorm_kernel(x_ref, scale_ref, shift_ref, o_ref, *, eps, inv_n):
    """Unpacked path: one logical row per block row, reduce across lanes."""
    # Pass 1: mean (upcast streamed per pass; no long-lived f32 tile copy).
    mean = jnp.sum(x_ref[...].astype(jnp.float32), axis=-1, keepdims=True) * inv_n
    # Pass 2: centered sum of squares (robust vs E[x^2]-E[x]^2 cancellation).
    d = x_ref[...].astype(jnp.float32) - mean
    var = jnp.sum(d * d, axis=-1, keepdims=True) * inv_n
    inv_std = jax.lax.rsqrt(var + eps)
    # Pass 3: normalize + affine.  Garbage rows of a ragged trailing block are
    # masked on the store and never contaminate valid rows (per-row reduction).
    o_ref[...] = (
        (x_ref[...].astype(jnp.float32) - mean) * inv_std
        * scale_ref[...].astype(jnp.float32)
        + shift_ref[...].astype(jnp.float32)
    ).astype(o_ref.dtype)


def _layernorm_packed_kernel(x_ref, scale_ref, shift_ref, blkdiag_ref, o_ref,
                             *, eps, inv_n):
    """Lane-packed path (emb_dim < 128): k = 128 // emb_dim rows per lane row.

    Per-segment (per logical row) sums are computed with a block-diagonal ones
    matmul on the otherwise-idle MXU, which also broadcasts each statistic back
    to every lane of its segment.  All loads/stores stay 128-lane dense.
    """
    x = x_ref[...].astype(jnp.float32)      # (tr, 128), lane-dense
    b = blkdiag_ref[...]                    # (128, 128) block-diagonal ones, f32
    mean = jnp.dot(x, b, preferred_element_type=jnp.float32) * inv_n
    d = x - mean
    var = jnp.dot(d * d, b, preferred_element_type=jnp.float32) * inv_n
    inv_std = jax.lax.rsqrt(var + eps)
    o_ref[...] = (
        d * inv_std * scale_ref[...].astype(jnp.float32)
        + shift_ref[...].astype(jnp.float32)
    ).astype(o_ref.dtype)


def _sublane_multiple(dtype):
    itemsize = jnp.dtype(dtype).itemsize
    if itemsize >= 4:
        return 8
    if itemsize == 2:
        return 16
    return 32


def _vmem_capacity_bytes():
    try:
        return int(pltpu.get_tpu_info().vmem_capacity_bytes)
    except Exception:
        # v5e/v6e have 128 MiB per TensorCore; the per-block byte target below
        # stays well under 64 MiB, so this fallback is also safe on v7x.
        return 128 * 1024 * 1024


def _target_block_bytes(vmem_cap):
    # HBM-bound: bigger blocks amortize the ~0.35 us per-grid-step overhead.
    if vmem_cap <= 64 * 1024 * 1024:   # v7x-class (64 MiB VMEM per TC)
        return 4 * 1024 * 1024
    return 12 * 1024 * 1024            # v5e / v6e (128 MiB VMEM)


def _pick_tile_rows(rows, width, itemsize, vmem_cap, sublane, requested=None):
    """Largest row tile hitting the per-block byte target (double-buffer aware),
    rounded to the dtype's sublane multiple, preferring >= 2 grid steps (v7x
    megacore sharding) and an evenly dividing tile (no ragged trailing block)."""
    if requested is not None:
        tile = max(1, int(requested))
        if tile < rows:
            tile = max(sublane, (tile // sublane) * sublane)
        return min(tile, rows)

    per_row_block = width * itemsize
    tile = _target_block_bytes(vmem_cap) // max(per_row_block, 1)
    # Keep the live footprint (double-buffered in + out blocks plus a couple of
    # f32 row-stat temporaries) under ~60% of VMEM.
    per_row_live = 4 * per_row_block + 2 * width * 4
    tile = min(tile, int(vmem_cap * 0.6) // max(per_row_live, 1))
    tile = max(sublane, (tile // sublane) * sublane)
    if tile >= rows:
        tile = rows
    # Prefer >= 2 grid steps: lets v7x shard the "parallel" axis over both
    # TensorCores and lets the in/out DMA pipeline with compute elsewhere.
    if rows >= 2 * sublane:
        half = ((rows // 2) // sublane) * sublane
        if half >= sublane:
            tile = min(tile, half)
    # Prefer an evenly dividing tile (within 2x) to avoid a ragged last block.
    if 0 < tile < rows:
        lower = max(sublane, (tile // 2 // sublane) * sublane)
        for cand in range(tile, lower - 1, -sublane):
            if rows % cand == 0:
                return cand
    return max(tile, 1)


def layernorm(x, scale, shift, eps=1e-8, tile_rows=None):
    """LayerNorm over the last dimension of x (PyTorch semantics, biased var).

    x:     [..., emb_dim]
    scale: [emb_dim]
    shift: [emb_dim]
    """
    orig_shape = x.shape
    emb_dim = orig_shape[-1]
    rows = 1
    for d in orig_shape[:-1]:
        rows *= d

    dtype = x.dtype
    itemsize = jnp.dtype(dtype).itemsize
    sublane = _sublane_multiple(dtype)
    vmem_cap = _vmem_capacity_bytes()

    # Lane packing for narrow feature dims.
    k = _LANES // emb_dim if (emb_dim < _LANES and _LANES % emb_dim == 0) else 1
    packed = k > 1 and rows % k == 0

    if packed:
        width = k * emb_dim                      # == 128
        p_rows = rows // k
        x2 = x.reshape(p_rows, width)
        scale2 = jnp.tile(jnp.reshape(scale, (-1,)), (k,)).reshape(1, width)
        shift2 = jnp.tile(jnp.reshape(shift, (-1,)), (k,)).reshape(1, width)
        seg = jnp.arange(width, dtype=jnp.int32) // emb_dim
        blkdiag = (seg[:, None] == seg[None, :]).astype(jnp.float32)
    else:
        width = emb_dim
        p_rows = rows
        x2 = x.reshape(p_rows, width)
        scale2 = jnp.reshape(scale, (1, width))
        shift2 = jnp.reshape(shift, (1, width))
        blkdiag = None

    tr = _pick_tile_rows(p_rows, width, itemsize, vmem_cap, sublane,
                         requested=tile_rows)
    num_steps = int(pl.cdiv(p_rows, tr))
    grid = (num_steps,)

    # Scoped VMEM: double-buffered in/out blocks + f32 temporaries + margin.
    block_bytes = tr * width * itemsize
    needed = 4 * block_bytes + 2 * tr * width * 4 + (2 << 20)
    vmem_limit = int(min(vmem_cap, max(needed, 32 << 20)))

    # Tiny blocks: triple-buffer to hide DMA issue latency (skip for large).
    if block_bytes < (2 << 20) and num_steps >= 3:
        x_spec = pl.BlockSpec((tr, width), lambda i: (i, 0),
                              pipeline_mode=pl.Buffered(3))
        out_spec = pl.BlockSpec((tr, width), lambda i: (i, 0),
                                pipeline_mode=pl.Buffered(3))
    else:
        x_spec = pl.BlockSpec((tr, width), lambda i: (i, 0))
        out_spec = pl.BlockSpec((tr, width), lambda i: (i, 0))

    # Constant-block-index params: Pallas skips the re-DMA when the block index
    # is unchanged across grid steps, so these cost one HBM copy total.
    param_spec = pl.BlockSpec((1, width), lambda i: (0, 0))

    cost = pl.CostEstimate(
        flops=10 * rows * emb_dim,
        transcendentals=rows,
        bytes_accessed=2 * rows * emb_dim * itemsize
        + 2 * emb_dim * jnp.dtype(scale.dtype).itemsize,
    )

    if packed:
        kernel = functools.partial(_layernorm_packed_kernel,
                                   eps=float(eps), inv_n=1.0 / float(emb_dim))
        in_specs = [x_spec, param_spec, param_spec,
                    pl.BlockSpec((width, width), lambda i: (0, 0))]
        operands = (x2, scale2, shift2, blkdiag)
    else:
        # TODO(synk): if a v7x bundle dump shows XLU as the binding slot for
        # bf16, fuse the mean / centered-sq reductions (or offload row sums to
        # the MXU as in the packed path); compute hides under DMA on v5e/v6e.
        kernel = functools.partial(_layernorm_kernel,
                                   eps=float(eps), inv_n=1.0 / float(emb_dim))
        in_specs = [x_spec, param_spec, param_spec]
        operands = (x2, scale2, shift2)

    out = pl.pallas_call(
        kernel,
        out_shape=jax.ShapeDtypeStruct((p_rows, width), dtype),
        grid_spec=pltpu.PrefetchScalarGridSpec(
            num_scalar_prefetch=0,
            grid=grid,
            in_specs=in_specs,
            out_specs=out_spec,
        ),
        compiler_params=pltpu.CompilerParams(
            dimension_semantics=("parallel",),
            vmem_limit_bytes=vmem_limit,
        ),
        cost_estimate=cost,
    )(*operands)

    return out.reshape(orig_shape)


if __name__ == "__main__":
    key = jax.random.PRNGKey(0)
    kx1, kx2, ks, kf = jax.random.split(key, 4)

    def reference(x, scale, shift, eps=1e-8):
        mean = jnp.mean(x, axis=-1, keepdims=True)
        var = jnp.mean((x - mean) ** 2, axis=-1, keepdims=True)
        return scale * ((x - mean) / jnp.sqrt(var + eps)) + shift

    # Case 1: narrow feature dim (lane-packed path), batch=2, seq=16, emb_dim=32.
    batch, seq, emb_dim = 2, 16, 32
    x1 = jax.random.normal(kx1, (batch, seq, emb_dim), dtype=jnp.float32)
    scale1 = 1.0 + 0.1 * jax.random.normal(ks, (emb_dim,), dtype=jnp.float32)
    shift1 = 0.1 * jax.random.normal(kf, (emb_dim,), dtype=jnp.float32)
    out1 = jax.block_until_ready(layernorm(x1, scale1, shift1, eps=1e-8))
    ref1 = reference(x1, scale1, shift1, eps=1e-8)
    assert jnp.allclose(out1, ref1, atol=1e-5, rtol=1e-5), "packed path mismatch"

    # Case 2: wide feature dim (unpacked path), batch=2, seq=8, emb_dim=256.
    batch, seq, emb_dim = 2, 8, 256
    x2 = jax.random.normal(kx2, (batch, seq, emb_dim), dtype=jnp.float32)
    scale2 = jnp.ones((emb_dim,), dtype=jnp.float32)      # module init
    shift2 = jnp.zeros((emb_dim,), dtype=jnp.float32)     # module init
    out2 = jax.block_until_ready(layernorm(x2, scale2, shift2, eps=1e-8))
    ref2 = reference(x2, scale2, shift2, eps=1e-8)
    assert jnp.allclose(out2, ref2, atol=1e-5, rtol=1e-5), "unpacked path mismatch"

    print("KERNEL_OK")
</pallas_src>

<mosaic_0001>
module attributes {stable_mosaic.version = 11 : i64} {
  func.func @_layernorm_packed_kernel(%arg0: i32, %arg1: memref<8x128xf32, #tpu.memory_space<vmem>>, %arg2: memref<1x128xf32, #tpu.memory_space<vmem>>, %arg3: memref<1x128xf32, #tpu.memory_space<vmem>>, %arg4: memref<128x128xf32, #tpu.memory_space<vmem>>, %arg5: memref<8x128xf32, #tpu.memory_space<vmem>>) attributes {dimension_semantics = [#tpu.dimension_semantics<parallel>], iteration_bounds = array<i64: 1>, scalar_prefetch = 0 : i64, scratch_operands = 0 : i64, tpu.core_type = #tpu.core_type<tc>, window_params = [{transform_indices = @transform_0, window_bounds = array<i64: 8, 128>}, {pipeline_mode = #tpu.pipeline_mode<synchronous>, transform_indices = @transform_1, window_bounds = array<i64: 1, 128>}, {pipeline_mode = #tpu.pipeline_mode<synchronous>, transform_indices = @transform_2, window_bounds = array<i64: 1, 128>}, {pipeline_mode = #tpu.pipeline_mode<synchronous>, transform_indices = @transform_3, window_bounds = array<i64: 128, 128>}, {transform_indices = @transform_4, window_bounds = array<i64: 8, 128>}]} {
    %c0 = arith.constant 0 : index
    %c0_0 = arith.constant 0 : index
    %0 = vector.load %arg1[%c0, %c0_0] : memref<8x128xf32, #tpu.memory_space<vmem>>, vector<8x128xf32>
    %c0_1 = arith.constant 0 : index
    %c0_2 = arith.constant 0 : index
    %1 = vector.load %arg4[%c0_1, %c0_2] : memref<128x128xf32, #tpu.memory_space<vmem>>, vector<128x128xf32>
    %cst = arith.constant dense<0.000000e+00> : vector<8x128xf32>
    %2 = tpu.matmul %0, %1, %cst {dimension_numbers = #tpu.dot_dimension_numbers<[1], [0], [0], [1], [0, 0, 1, 1], [], []>} : vector<8x128xf32>, vector<128x128xf32>, vector<8x128xf32> -> vector<8x128xf32>
    %cst_3 = arith.constant 3.125000e-02 : f32
    %3 = vector.broadcast %cst_3 : f32 to vector<8x128xf32>
    %4 = arith.mulf %2, %3 : vector<8x128xf32>
    %5 = arith.subf %0, %4 : vector<8x128xf32>
    %6 = arith.mulf %5, %5 : vector<8x128xf32>
    %cst_4 = arith.constant dense<0.000000e+00> : vector<8x128xf32>
    %7 = tpu.matmul %6, %1, %cst_4 {dimension_numbers = #tpu.dot_dimension_numbers<[1], [0], [0], [1], [0, 0, 1, 1], [], []>} : vector<8x128xf32>, vector<128x128xf32>, vector<8x128xf32> -> vector<8x128xf32>
    %cst_5 = arith.constant 3.125000e-02 : f32
    %8 = vector.broadcast %cst_5 : f32 to vector<8x128xf32>
    %9 = arith.mulf %7, %8 : vector<8x128xf32>
    %cst_6 = arith.constant 9.99999993E-9 : f32
    %10 = vector.broadcast %cst_6 : f32 to vector<8x128xf32>
    %11 = arith.addf %9, %10 : vector<8x128xf32>
    %12 = math.rsqrt %11 : vector<8x128xf32>
    %13 = arith.mulf %5, %12 : vector<8x128xf32>
    %c0_7 = arith.constant 0 : index
    %c0_8 = arith.constant 0 : index
    %14 = vector.load %arg2[%c0_7, %c0_8] : memref<1x128xf32, #tpu.memory_space<vmem>>, vector<1x128xf32>
    %15 = vector.broadcast %14 : vector<1x128xf32> to vector<8x128xf32>
    %16 = arith.mulf %13, %15 : vector<8x128xf32>
    %c0_9 = arith.constant 0 : index
    %c0_10 = arith.constant 0 : index
    %17 = vector.load %arg3[%c0_9, %c0_10] : memref<1x128xf32, #tpu.memory_space<vmem>>, vector<1x128xf32>
    %18 = vector.broadcast %17 : vector<1x128xf32> to vector<8x128xf32>
    %19 = arith.addf %16, %18 : vector<8x128xf32>
    %c0_11 = arith.constant 0 : index
    %c0_12 = arith.constant 0 : index
    %20 = vector.load %arg5[%c0_11, %c0_12] : memref<8x128xf32, #tpu.memory_space<vmem>>, vector<8x128xf32>
    tpu.vector_store %arg5[%c0_11, %c0_12], %19 {strides = array<i32>} : memref<8x128xf32, #tpu.memory_space<vmem>>, vector<8x128xf32>,
    return
  }
  func.func @transform_0(%arg0: i32) -> (i32, i32) {
    %c0_i32 = arith.constant 0 : i32
    %c0_i32_0 = arith.constant 0 : i32
    return %arg0, %c0_i32 : i32, i32
  }
  func.func @transform_1(%arg0: i32) -> (i32, i32) {
    %c0_i32 = arith.constant 0 : i32
    %c0_i32_0 = arith.constant 0 : i32
    %c0_i32_1 = arith.constant 0 : i32
    return %c0_i32, %c0_i32_0 : i32, i32
  }
  func.func @transform_2(%arg0: i32) -> (i32, i32) {
    %c0_i32 = arith.constant 0 : i32
    %c0_i32_0 = arith.constant 0 : i32
    %c0_i32_1 = arith.constant 0 : i32
    return %c0_i32, %c0_i32_0 : i32, i32
  }
  func.func @transform_3(%arg0: i32) -> (i32, i32) {
    %c0_i32 = arith.constant 0 : i32
    %c0_i32_0 = arith.constant 0 : i32
    %c0_i32_1 = arith.constant 0 : i32
    return %c0_i32, %c0_i32_0 : i32, i32
  }
  func.func @transform_4(%arg0: i32) -> (i32, i32) {
    %c0_i32 = arith.constant 0 : i32
    %c0_i32_0 = arith.constant 0 : i32
    return %arg0, %c0_i32 : i32, i32
  }
}

</mosaic_0001>

<llo_original>
// kernel: tpu_custom_call.1
$region0: #{tpu_custom_call.1}
  #allocation0 [shape = 'u32[]', space=smem, size = 0x4, offset = 0x4, fixed_abs, tag = 'smem constant byte address 0x4 - core index']
  #allocation1 [shape = 'u32[72,128]{1,0:T(1,128)}', space=vmem, size = 0x9000, scoped, tag = 'internal scratch']
  %s0 = inlined_call_operand.hbm [shape: f32[8,128], index: 0, kind: input, shape index: {}]
  %s1 = inlined_call_operand.hbm [shape: f32[1,128], index: 1, kind: input, shape index: {}]
  %s2 = inlined_call_operand.vmem [shape: f32[1,128], index: 2, kind: input, shape index: {}]
  %s3 = inlined_call_operand.hbm [shape: f32[128,128], index: 3, kind: input, shape index: {}]
  %s4 = inlined_call_operand.hbm [shape: f32[8,128], index: 4, kind: output, shape index: {}]
  %s5 = sld [smem:[#allocation0]]
  $region38: #{tpu_custom_call.1} parent=0
    _
  %s7 = ssub.s32 1, %s5
  %s8 = scalar_select 0, %s7, %s5
  $region1: #{tpu_custom_call.1} parent=0
    #allocation2 [shape = 'u8[4096]{0}', space=vmem, size = 0x1000, scoped, tag = 'input window, operand 0, single buffered']
    #allocation3 [shape = 's32[1]{0}', space=sflag, size = 0x4, scoped, tag = 'scoped memory for tpu_custom_call.1']
    #allocation4 [shape = 's32[1]{0}', space=sflag, size = 0x4, scoped, tag = 'scoped memory for tpu_custom_call.1']
    #allocation5 [shape = 'u8[512]{0}', space=vmem, size = 0x400, scoped, tag = 'input window, operand 1, single buffered']
    #allocation6 [shape = 's32[1]{0}', space=sflag, size = 0x4, scoped, tag = 'scoped memory for tpu_custom_call.1']
    #allocation7 [shape = 'u8[65536]{0}', space=vmem, size = 0x10000, scoped, tag = 'input window, operand 3, single buffered']
    #allocation8 [shape = 'u8[4096]{0}', space=vmem, size = 0x1000, scoped, tag = 'output window, operand 0, single buffered']
    %9 = vsyncpa [#allocation3], 0
    %10 = vsyncpa [#allocation6], 0
    %11 = vsyncpa [#allocation4], 0
    // Predicated region
    $region2: #{tpu_custom_call.1} parent=1 // pred_check
      _
    $region3: #{tpu_custom_call.1} parent=1 // pred_check_branch
      %13 = sbr.rel (0) target = $region5
    $region4: #{tpu_custom_call.1} parent=1 // pred_region
      %15 = vsyncadd [#allocation3], 0
      %s17 = sshll.u32 %s0, 4
      %s18 = int_to_ptr.hbm [resolvable:$true] %s17
      %s19 = sshll.u32 [#allocation2], 4
      %s20 = int_to_ptr.vmem [resolvable:$true] %s19
      %22 = dma.hbm_to_vmem [thread:$0]  %s18, 128, %s20, [#allocation3]
    $region5: #{tpu_custom_call.1} parent=1 // pred_fallthru
      _
    // Predicated region
    $region6: #{tpu_custom_call.1} parent=1 // pred_check
      _
    $region7: #{tpu_custom_call.1} parent=1 // pred_check_branch
      %24 = sbr.rel (0) target = $region9
    $region8: #{tpu_custom_call.1} parent=1 // pred_region
      %26 = vsyncadd [#allocation6], 0
      %s28 = sshll.u32 %s1, 4
      %s29 = int_to_ptr.hbm [resolvable:$true] %s28
      %s30 = sshll.u32 [#allocation5], 4
      %s31 = int_to_ptr.vmem [resolvable:$true] %s30
      %33 = dma.hbm_to_vmem [thread:$0]  %s29, 16, %s31, [#allocation6]
    $region9: #{tpu_custom_call.1} parent=1 // pred_fallthru
      _
    // Predicated region
    $region10: #{tpu_custom_call.1} parent=1 // pred_check
      _
    $region11: #{tpu_custom_call.1} parent=1 // pred_check_branch
      %35 = sbr.rel (0) target = $region13
    $region12: #{tpu_custom_call.1} parent=1 // pred_region
      _
    $region13: #{tpu_custom_call.1} parent=1 // pred_fallthru
      _
    // Predicated region
    $region14: #{tpu_custom_call.1} parent=1 // pred_check
      _
    $region15: #{tpu_custom_call.1} parent=1 // pred_check_branch
      %37 = sbr.rel (0) target = $region17
    $region16: #{tpu_custom_call.1} parent=1 // pred_region
      %39 = vsyncadd [#allocation6], 0
      %s40 = sshll.u32 %s3, 4
      %s41 = int_to_ptr.hbm [resolvable:$true] %s40
      %s42 = sshll.u32 [#allocation7], 4
      %s43 = int_to_ptr.vmem [resolvable:$true] %s42
      %48 = dma.hbm_to_vmem [thread:$0]  %s41, 2048, %s43, [#allocation6], 128, 128, 8
    $region17: #{tpu_custom_call.1} parent=1 // pred_fallthru
      _
    // Predicated region
    $region18: #{tpu_custom_call.1} parent=1 // pred_check
      _
    $region19: #{tpu_custom_call.1} parent=1 // pred_check_branch
      %50 = sbr.rel (0) target = $region21
    $region20: #{tpu_custom_call.1} parent=1 // pred_region
      %52 = dma.done [#allocation3], 128
    $region21: #{tpu_custom_call.1} parent=1 // pred_fallthru
      _
    // Predicated region
    $region22: #{tpu_custom_call.1} parent=1 // pred_check
      _
    $region23: #{tpu_custom_call.1} parent=1 // pred_check_branch
      %54 = sbr.rel (0) target = $region25
    $region24: #{tpu_custom_call.1} parent=1 // pred_region
      %56 = dma.done [#allocation6], 16
    $region25: #{tpu_custom_call.1} parent=1 // pred_fallthru
      _
    // Predicated region
    $region26: #{tpu_custom_call.1} parent=1 // pred_check
      _
    $region27: #{tpu_custom_call.1} parent=1 // pred_check_branch
      %58 = sbr.rel (0) target = $region29
    $region28: #{tpu_custom_call.1} parent=1 // pred_region
      %60 = dma.done [#allocation6], 2048
    $region29: #{tpu_custom_call.1} parent=1 // pred_fallthru
      _
    %v61 = vld [vmem:[#allocation2] sm:$0xff]
    %v62 = vld [vmem:[#allocation7] sm:$0xff]
    %v63 = vld [vmem:[#allocation7 + $0x8] sm:$0xff]
    %v64 = vld [vmem:[#allocation7 + $0x10] sm:$0xff]
    %v65 = vld [vmem:[#allocation7 + $0x18] sm:$0xff]
    %v66 = vld [vmem:[#allocation7 + $0x20] sm:$0xff]
    %v67 = vld [vmem:[#allocation7 + $0x28] sm:$0xff]
    %v68 = vld [vmem:[#allocation7 + $0x30] sm:$0xff]
    %v69 = vld [vmem:[#allocation7 + $0x38] sm:$0xff]
    %v70 = vld [vmem:[#allocation7 + $0x40] sm:$0xff]
    %v71 = vld [vmem:[#allocation7 + $0x48] sm:$0xff]
    %v72 = vld [vmem:[#allocation7 + $0x50] sm:$0xff]
    %v73 = vld [vmem:[#allocation7 + $0x58] sm:$0xff]
    %v74 = vld [vmem:[#allocation7 + $0x60] sm:$0xff]
    %v75 = vld [vmem:[#allocation7 + $0x68] sm:$0xff]
    %v76 = vld [vmem:[#allocation7 + $0x70] sm:$0xff]
    %v77 = vld [vmem:[#allocation7 + $0x78] sm:$0xff]
    %78 = vmatpush.msra.mxu0 %v77
    %79 = vmatpush.msra.mxu0 %v76
    %80 = vmatpush.msra.mxu0 %v75
    %81 = vmatpush.msra.mxu0 %v74
    %82 = vmatpush.msra.mxu0 %v73
    %83 = vmatpush.msra.mxu0 %v72
    %84 = vmatpush.msra.mxu0 %v71
    %85 = vmatpush.msra.mxu0 %v70
    %86 = vmatpush.msra.mxu0 %v69
    %87 = vmatpush.msra.mxu0 %v68
    %88 = vmatpush.msra.mxu0 %v67
    %89 = vmatpush.msra.mxu0 %v66
    %90 = vmatpush.msra.mxu0 %v65
    %91 = vmatpush.msra.mxu0 %v64
    %92 = vmatpush.msra.mxu0 %v63
    %93 = vmatpush.msra.mxu0 %v62
    %94 = vmatmul.f32.gmra.mxu0 %v61
    %v95 = vpop.f32.mrf.mxu0
    %v96 = vadd.f32 0.0, %v95
    %97 = vdwg.mxu0
    %v98 = vmul.f32 %v96, 0.03125
    %v99 = vsub.f32 %v61, %v98
    %v100 = vmul.f32 %v99, %v99
    %101 = vmatpush.msra.mxu0 %v77
    %102 = vmatpush.msra.mxu0 %v76
    %103 = vmatpush.msra.mxu0 %v75
    %104 = vmatpush.msra.mxu0 %v74
    %105 = vmatpush.msra.mxu0 %v73
    %106 = vmatpush.msra.mxu0 %v72
    %107 = vmatpush.msra.mxu0 %v71
    %108 = vmatpush.msra.mxu0 %v70
    %109 = vmatpush.msra.mxu0 %v69
    %110 = vmatpush.msra.mxu0 %v68
    %111 = vmatpush.msra.mxu0 %v67
    %112 = vmatpush.msra.mxu0 %v66
    %113 = vmatpush.msra.mxu0 %v65
    %114 = vmatpush.msra.mxu0 %v64
    %115 = vmatpush.msra.mxu0 %v63
    %116 = vmatpush.msra.mxu0 %v62
    %117 = vmatmul.f32.gmra.mxu0 %v100
    %v118 = vpop.f32.mrf.mxu0
    %v119 = vadd.f32 0.0, %v118
    %120 = vdwg.mxu0
    %v121 = vmul.f32 %v119, 0.03125
    %v122 = vadd.f32 %v121, 1e-08
    %v123 = vrsqrt.pop %v122
    %v124 = vmul.f32 %v123, %v122
    %v125 = vmul.f32 %v124, %v123
    %v126 = vmul.f32 0.5, %v125
    %v127 = vsub.f32 1.5, %v126
    %v128 = vmul.f32 %v123, %v127
    %vm129 = vweird.f32 %v122
    %vm130 = vweird.f32 %v123
    %vm131 = vmor %vm129, %vm130
    %v132 = vsel %vm131, %v123, %v128
    %v133 = vmul.f32 %v99, %v132
    %v134 = vld [vmem:[#allocation5] sm:$0x1]
    %v136 = vperm.slane %v134, 0
    %v138 = vmul.f32 %v133, %v136
    %v139 = vld [vmem:[%s2] sm:$0x1]
    %v141 = vperm.slane %v139, 0
    %v143 = vadd.f32 %v138, %v141
    %144 = vst [vmem:[#allocation8] sm:$0xff] %v143
    // Predicated region
    $region30: #{tpu_custom_call.1} parent=1 // pred_check
      _
    $region31: #{tpu_custom_call.1} parent=1 // pred_check_branch
      %146 = sbr.rel (0) target = $region33
    $region32: #{tpu_custom_call.1} parent=1 // pred_region
      %148 = vsyncadd [#allocation4], 0
      %s150 = sshll.u32 [#allocation8], 4
      %s151 = int_to_ptr.vmem [resolvable:$true] %s150
      %s152 = sshll.u32 %s4, 4
      %s153 = int_to_ptr.hbm [resolvable:$true] %s152
      %155 = dma.vmem_to_hbm [thread:$0]  %s151, 128, %s153, [#allocation4]
    $region33: #{tpu_custom_call.1} parent=1 // pred_fallthru
      _
    // Predicated region
    $region34: #{tpu_custom_call.1} parent=1 // pred_check
      _
    $region35: #{tpu_custom_call.1} parent=1 // pred_check_branch
      %157 = sbr.rel (0) target = $region37
    $region36: #{tpu_custom_call.1} parent=1 // pred_region
      %159 = dma.done [#allocation4], 128
    $region37: #{tpu_custom_call.1} parent=1 // pred_fallthru
      _
    %160 = vsyncpa [#allocation3], 1
    %161 = vsyncpa [#allocation6], 1
    %162 = vsyncpa [#allocation4], 1

</llo_original>
